<compile_context>
chip_gen: v5e
topology: v5e:2x2
jax: 0.10.0
libtpu: 0.0.40
codegen_flags: <defaults>
</compile_context>

<pallas_src>
import jax
import jax.numpy as jnp
from jax.experimental import pallas as pl
from jax.experimental.pallas import tpu as pltpu

_LANES = 128
_SMALL_OUT_ROW_BYTES = 512       # fewer than 128 f32 lanes in the output row
_SMALL_TOTAL_BYTES = 1 << 20     # 1 MiB of output


def _sublane_multiple(dtype) -> int:
    """Sublane quantum for the (8,128) vreg tiling; sub-32-bit packs sublanes."""
    itemsize = jnp.dtype(dtype).itemsize
    return max(8, 32 // itemsize)  # 8 for f32/i32, 16 for bf16, 32 for int8


def _vmem_budget_and_limit():
    """(double-buffered tile budget, scoped-VMEM limit) sized to this chip."""
    cap = None
    try:
        cap = getattr(pltpu.get_tpu_info(), "vmem_capacity_bytes", None)
    except Exception:
        cap = None
    if not cap:
        cap = 64 << 20  # conservative: v7x per-TC VMEM
    budget = min(cap // 4, 32 << 20)   # 16 MiB on v7x, 32 MiB on v5e/v6e
    limit = min(cap // 2, 2 * budget)  # 32 MiB on v7x, 64 MiB on v5e/v6e
    return int(budget), int(limit)


def _make_cat_kernel(feat):
    """Build the kernel for a fixed tuple of input widths."""
    offsets = []
    off = 0
    for f in feat:
        offsets.append(off)
        off += f
    aligned = all(f % _LANES == 0 for f in feat)

    if aligned:
        # Every input width (and hence every cumulative offset) is a multiple
        # of 128 lanes: write each input slab directly at its static lane
        # offset -> unmasked full-width stores, no cross-lane shuffles.
        def kernel(*refs):
            out_ref = refs[-1]
            for r, o, f in zip(refs[:-1], offsets, feat):
                out_ref[:, o:o + f] = r[...]
    else:
        # Misaligned widths: concatenate in registers once, then a single
        # dense store of the full (tile_r, sum(feat)) tile. The trailing
        # partial vreg of the output row still takes a masked store when
        # sum(feat) % 128 != 0 -- unavoidable for this layout.
        def kernel(*refs):
            out_ref = refs[-1]
            out_ref[...] = jnp.concatenate([r[...] for r in refs[:-1]], axis=-1)

    return kernel


def cat_last_dim(tensors, *, small_input_fallback: bool = True,
                 max_tile_rows: int = 2048):
    """Concatenate a list of arrays along the last dim (torch.cat semantics)."""
    assert len(tensors) >= 1
    lead_shape = tensors[0].shape[:-1]
    dtype = tensors[0].dtype
    for t in tensors:
        assert t.ndim >= 1
        assert t.shape[:-1] == lead_shape, "leading dims must match (torch.cat)"
        assert t.dtype == dtype, "dtypes must match (torch.cat)"

    rows = 1
    for d in lead_shape:
        rows *= d
    feat = [t.shape[-1] for t in tensors]
    out_cols = sum(feat)
    itemsize = jnp.dtype(dtype).itemsize

    # --- degenerate / small-input fast paths --------------------------------
    degenerate = (rows == 0) or (out_cols == 0) or any(f == 0 for f in feat)
    small = (out_cols * itemsize < _SMALL_OUT_ROW_BYTES or
             rows * out_cols * itemsize < _SMALL_TOTAL_BYTES)
    if degenerate or (small_input_fallback and small):
        return jnp.concatenate(tensors, axis=-1)

    flat = [t.reshape(rows, f) for t, f in zip(tensors, feat)]
    sub = _sublane_multiple(dtype)
    budget, vmem_limit = _vmem_budget_and_limit()

    # --- choose the row tile -------------------------------------------------
    # Double-buffered footprint ~= 2*(inputs) + 2*(output)
    #                           ~= 4 * tile_r * out_cols * itemsize.
    max_by_vmem = budget // max(1, 4 * out_cols * itemsize)
    max_by_vmem = max(sub, (max_by_vmem // sub) * sub)
    tile_r = min(max_tile_rows, max_by_vmem)
    # Don't tile beyond the (sublane-rounded) row count of the actual data.
    tile_r = min(tile_r, pl.cdiv(rows, sub) * sub)
    tile_r = max(sub, (tile_r // sub) * sub)
    num_tiles = pl.cdiv(rows, tile_r)

    # Keep >= 2 grid steps when rows allow, so the "parallel" row axis can be
    # sharded across both TensorCores on multi-TC parts (v7x).
    if num_tiles < 2 and rows > sub:
        half = pl.cdiv(pl.cdiv(rows, 2), sub) * sub
        if sub <= half < rows:
            tile_r = half
            num_tiles = pl.cdiv(rows, tile_r)

    # Block last dim == full array last dim (exempt from the 128 rule);
    # block second-to-last dim (tile_r) is a multiple of the sublane quantum.
    in_specs = [pl.BlockSpec((tile_r, f), lambda i: (i, 0)) for f in feat]
    out_spec = pl.BlockSpec((tile_r, out_cols), lambda i: (i, 0))

    bytes_accessed = int(2 * rows * out_cols * itemsize)  # read inputs + write out

    out_flat = pl.pallas_call(
        _make_cat_kernel(tuple(feat)),
        out_shape=jax.ShapeDtypeStruct((rows, out_cols), dtype),
        grid=(num_tiles,),
        in_specs=in_specs,
        out_specs=out_spec,
        compiler_params=pltpu.CompilerParams(
            dimension_semantics=("parallel",),
            vmem_limit_bytes=vmem_limit,
        ),
        cost_estimate=pl.CostEstimate(
            flops=0, transcendentals=0, bytes_accessed=bytes_accessed),
    )(*flat)

    return out_flat.reshape(*lead_shape, out_cols)


class CatTensors:
    """JAX/Pallas equivalent of _CatTensors: td[out_key] = cat(td[in_keys], -1)."""

    def __init__(self, in_keys, out_key):
        self.in_keys = list(in_keys)
        self.out_key = out_key

    def __call__(self, td: dict) -> dict:
        td = dict(td)  # don't mutate caller's dict structure
        td[self.out_key] = cat_last_dim([td[k] for k in self.in_keys])
        return td


if __name__ == "__main__":
    key = jax.random.PRNGKey(0)
    k1, k2, k3, k4, k5, k6, k7 = jax.random.split(key, 7)

    # 1) Module-level test at small shapes (takes the jnp.concatenate bypass,
    #    which is the intended fast path for tiny concats).
    td = {
        "obs_a": jax.random.normal(k1, (2, 8, 32), dtype=jnp.float32),
        "obs_b": jax.random.normal(k2, (2, 8, 16), dtype=jnp.float32),
        "obs_c": jax.random.normal(k3, (2, 8, 48), dtype=jnp.float32),
    }
    module = CatTensors(in_keys=["obs_a", "obs_b", "obs_c"], out_key="obs_cat")
    out_td = module(td)
    result = jax.block_until_ready(out_td["obs_cat"])
    ref = jnp.concatenate([td["obs_a"], td["obs_b"], td["obs_c"]], axis=-1)
    assert result.shape == (2, 8, 96), result.shape
    assert result.dtype == jnp.float32
    assert jnp.array_equal(result, ref)

    # 2) Forced Pallas path, 128-aligned widths -> direct-slab (unmasked) stores,
    #    row-tiled grid with >= 2 steps.
    a = jax.random.normal(k4, (2, 8, 128), dtype=jnp.float32)
    b = jax.random.normal(k5, (2, 8, 256), dtype=jnp.float32)
    got = jax.block_until_ready(cat_last_dim([a, b], small_input_fallback=False))
    assert jnp.array_equal(got, jnp.concatenate([a, b], axis=-1))

    # 3) Forced Pallas path, misaligned widths + rows not a multiple of 8
    #    -> in-register concat path + edge-tile masking.
    c = jax.random.normal(k6, (3, 7, 32), dtype=jnp.float32)
    d = jax.random.normal(k7, (3, 7, 48), dtype=jnp.float32)
    got2 = jax.block_until_ready(cat_last_dim([c, d], small_input_fallback=False))
    assert jnp.array_equal(got2, jnp.concatenate([c, d], axis=-1))

    print("KERNEL_OK")
</pallas_src>

<mosaic_0001>
module attributes {stable_mosaic.version = 11 : i64} {
  func.func @kernel(%arg0: i32, %arg1: memref<8x128xf32, #tpu.memory_space<vmem>>, %arg2: memref<8x256xf32, #tpu.memory_space<vmem>>, %arg3: memref<8x384xf32, #tpu.memory_space<vmem>>) attributes {dimension_semantics = [#tpu.dimension_semantics<parallel>], iteration_bounds = array<i64: 2>, scalar_prefetch = 0 : i64, scratch_operands = 0 : i64, tpu.core_type = #tpu.core_type<tc>, window_params = [{transform_indices = @transform_0, window_bounds = array<i64: 8, 128>}, {transform_indices = @transform_1, window_bounds = array<i64: 8, 256>}, {transform_indices = @transform_2, window_bounds = array<i64: 8, 384>}]} {
    %c0 = arith.constant 0 : index
    %c0_0 = arith.constant 0 : index
    %0 = vector.load %arg1[%c0, %c0_0] : memref<8x128xf32, #tpu.memory_space<vmem>>, vector<8x128xf32>
    %c0_1 = arith.constant 0 : index
    %c0_2 = arith.constant 0 : index
    %1 = vector.load %arg3[%c0_1, %c0_2] : memref<8x384xf32, #tpu.memory_space<vmem>>, vector<8x128xf32>
    tpu.vector_store %arg3[%c0_1, %c0_2], %0 {strides = array<i32>} : memref<8x384xf32, #tpu.memory_space<vmem>>, vector<8x128xf32>,
    %c0_3 = arith.constant 0 : index
    %c0_4 = arith.constant 0 : index
    %2 = vector.load %arg2[%c0_3, %c0_4] : memref<8x256xf32, #tpu.memory_space<vmem>>, vector<8x256xf32>
    %c0_5 = arith.constant 0 : index
    %c128 = arith.constant 128 : index
    %3 = vector.load %arg3[%c0_5, %c128] : memref<8x384xf32, #tpu.memory_space<vmem>>, vector<8x256xf32>
    tpu.vector_store %arg3[%c0_5, %c128], %2 {strides = array<i32>} : memref<8x384xf32, #tpu.memory_space<vmem>>, vector<8x256xf32>,
    return
  }
  func.func @transform_0(%arg0: i32) -> (i32, i32) {
    %c0_i32 = arith.constant 0 : i32
    %c0_i32_0 = arith.constant 0 : i32
    return %arg0, %c0_i32 : i32, i32
  }
  func.func @transform_1(%arg0: i32) -> (i32, i32) {
    %c0_i32 = arith.constant 0 : i32
    %c0_i32_0 = arith.constant 0 : i32
    return %arg0, %c0_i32 : i32, i32
  }
  func.func @transform_2(%arg0: i32) -> (i32, i32) {
    %c0_i32 = arith.constant 0 : i32
    %c0_i32_0 = arith.constant 0 : i32
    return %arg0, %c0_i32 : i32, i32
  }
}

</mosaic_0001>

<llo_original>
// kernel: tpu_custom_call.1
$region0: #{tpu_custom_call.1}
  #allocation0 [shape = 'u32[]', space=smem, size = 0x4, offset = 0x4, fixed_abs, tag = 'smem constant byte address 0x4 - core index']
  #allocation1 [shape = 'u32[72,128]{1,0:T(1,128)}', space=vmem, size = 0x9000, scoped, tag = 'internal scratch']
  %s0 = inlined_call_operand.hbm [shape: f32[16,128], index: 0, kind: input, shape index: {}]
  %s1 = inlined_call_operand.hbm [shape: f32[16,256], index: 1, kind: input, shape index: {}]
  %s2 = inlined_call_operand.hbm [shape: f32[16,384], index: 2, kind: output, shape index: {}]
  %s3 = sld [smem:[#allocation0]]
  $region49: #{tpu_custom_call.1} parent=0
    _
  %s5 = ssub.s32 1, %s3
  %s6 = scalar_select 0, %s5, %s3
  $region1: #{tpu_custom_call.1} parent=0
    #allocation2 [shape = 'u8[8192]{0}', space=vmem, size = 0x2000, scoped, tag = 'input window, operand 0']
    #allocation3 [shape = 's32[2]{0}', space=sflag, size = 0x8, scoped, tag = 'scoped memory for tpu_custom_call.1']
    #allocation4 [shape = 's32[2]{0}', space=sflag, size = 0x8, scoped, tag = 'scoped memory for tpu_custom_call.1']
    #allocation5 [shape = 'u8[16384]{0}', space=vmem, size = 0x4000, scoped, tag = 'input window, operand 1']
    #allocation6 [shape = 's32[2]{0}', space=sflag, size = 0x8, scoped, tag = 'scoped memory for tpu_custom_call.1']
    #allocation7 [shape = 'u8[24576]{0}', space=vmem, size = 0x6000, scoped, tag = 'output window, operand 0']
    %7 = vsyncpa [#allocation3], 0
    %s8 = scalar_lea.sflag [#allocation3], 1
    %9 = vsyncpa %s8, 0
    %10 = vsyncpa [#allocation6], 0
    %s11 = scalar_lea.sflag [#allocation6], 1
    %12 = vsyncpa %s11, 0
    %13 = vsyncpa [#allocation4], 0
    %s14 = scalar_lea.sflag [#allocation4], 1
    %15 = vsyncpa %s14, 0
    loop: start=0, step=1, limit=4
    $region2: #{tpu_custom_call.1} parent=1 // loop_pre_header
      _
    $region3: #{tpu_custom_call.1} parent=1 // loop_header
      %s17 = sphi 0, %s21
      %p18 = scmp.ge.s32.totalorder %s17, 4
      %s27 = sphi 0, %s29
      %s30 = sphi 0, %s27
      %s31 = sphi 0, %s30
      %s47 = sphi 0, %s31
      %s53 = sphi 0, %s55
      %s56 = sphi 0, %s53
      %s57 = sphi 0, %s56
      %s73 = sphi 0, %s57
      %s79 = sphi 0, %s81
      %s82 = sphi 0, %s79
      %s83 = sphi 0, %s82
      %s99 = sphi 0, %s83
    $region4: #{tpu_custom_call.1} parent=1 // loop_header_branch
      %20 = sbr.rel (%p18) target = $region8
    $region5: #{tpu_custom_call.1} parent=1 // loop_body
      %s22 = ssub.s32 %s17, 1
      %s23 = ssub.s32 %s17, 2
      %s24 = sadd.s32 %s17, 1
      %s25 = ssub.s32 %s17, %s24
      %p26 = scmp.eq.s32.totalorder %s25, 0
      %s28 = sadd.s32 %s27, 1
      %s29 = scalar_select %p26, %s27, %s28
      %p32 = pneg %p26
      %p33 = scmp.eq.s32.totalorder %s17, 1
      %p34 = por %p32, %p33
      %p35 = scmp.ne.s32.totalorder %s27, %s30
      %p36 = scmp.eq.s32.totalorder %s17, 0
      %p37 = por %p35, %p36
      %p38 = scmp.ne.s32.totalorder %s27, %s30
      %p39 = scmp.eq.s32.totalorder %s22, 1
      %p40 = por %p38, %p39
      %p41 = scmp.ne.s32.totalorder %s30, %s31
      %p42 = scmp.eq.s32.totalorder %s22, 0
      %p43 = por %p41, %p42
      %p44 = scmp.ne.s32.totalorder %s30, %s31
      %p45 = scmp.eq.s32.totalorder %s23, 1
      %p46 = por %p44, %p45
      %p48 = scmp.ne.s32.totalorder %s31, %s47
      %p49 = scmp.eq.s32.totalorder %s23, 0
      %p50 = por %p48, %p49
      %s51 = ssub.s32 %s17, %s24
      %p52 = scmp.eq.s32.totalorder %s51, 0
      %s54 = sadd.s32 %s53, 1
      %s55 = scalar_select %p52, %s53, %s54
      %p58 = pneg %p52
      %p59 = scmp.eq.s32.totalorder %s17, 1
      %p60 = por %p58, %p59
      %p61 = scmp.ne.s32.totalorder %s53, %s56
      %p62 = scmp.eq.s32.totalorder %s17, 0
      %p63 = por %p61, %p62
      %p64 = scmp.ne.s32.totalorder %s53, %s56
      %p65 = scmp.eq.s32.totalorder %s22, 1
      %p66 = por %p64, %p65
      %p67 = scmp.ne.s32.totalorder %s56, %s57
      %p68 = scmp.eq.s32.totalorder %s22, 0
      %p69 = por %p67, %p68
      %p70 = scmp.ne.s32.totalorder %s56, %s57
      %p71 = scmp.eq.s32.totalorder %s23, 1
      %p72 = por %p70, %p71
      %p74 = scmp.ne.s32.totalorder %s57, %s73
      %p75 = scmp.eq.s32.totalorder %s23, 0
      %p76 = por %p74, %p75
      %s77 = ssub.s32 %s17, %s24
      %p78 = scmp.eq.s32.totalorder %s77, 0
      %s80 = sadd.s32 %s79, 1
      %s81 = scalar_select %p78, %s79, %s80
      %p84 = pneg %p78
      %p85 = scmp.eq.s32.totalorder %s17, 1
      %p86 = por %p84, %p85
      %p87 = scmp.ne.s32.totalorder %s79, %s82
      %p88 = scmp.eq.s32.totalorder %s17, 0
      %p89 = por %p87, %p88
      %p90 = scmp.ne.s32.totalorder %s79, %s82
      %p91 = scmp.eq.s32.totalorder %s22, 1
      %p92 = por %p90, %p91
      %p93 = scmp.ne.s32.totalorder %s82, %s83
      %p94 = scmp.eq.s32.totalorder %s22, 0
      %p95 = por %p93, %p94
      %p96 = scmp.ne.s32.totalorder %s82, %s83
      %p97 = scmp.eq.s32.totalorder %s23, 1
      %p98 = por %p96, %p97
      %p100 = scmp.ne.s32.totalorder %s83, %s99
      %p101 = scmp.eq.s32.totalorder %s23, 0
      %p102 = por %p100, %p101
      %p103 = scmp.le.s32.totalorder 1, %s17
      %p104 = scmp.lt.s32.totalorder %s17, 3
      %p105 = pnand %p103, %p104
      %p106 = pneg %p105
      // Predicated region
      $region9: #{tpu_custom_call.1} parent=5 // pred_check
        _
      $region10: #{tpu_custom_call.1} parent=5 // pred_check_branch
        %108 = sbr.rel (%p105) target = $region12
      $region11: #{tpu_custom_call.1} parent=5 // pred_region
        %s109 = ssub.s32 %s17, 1
      $region12: #{tpu_custom_call.1} parent=5 // pred_fallthru
        _
      %p110 = scmp.lt.s32.totalorder %s17, 2
      // Predicated region
      $region13: #{tpu_custom_call.1} parent=5 // pred_check
        %p111 = pneg %p110
      $region14: #{tpu_custom_call.1} parent=5 // pred_check_branch
        %113 = sbr.rel (%p111) target = $region16
      $region15: #{tpu_custom_call.1} parent=5 // pred_region
        // Predicated region
        $region17: #{tpu_custom_call.1} parent=15 // pred_check
          %p114 = pneg %p37
        $region18: #{tpu_custom_call.1} parent=15 // pred_check_branch
          %116 = sbr.rel (%p114) target = $region20
        $region19: #{tpu_custom_call.1} parent=15 // pred_region
          %s117 = sand.u32 %s27, 1
          %s118 = scalar_lea.sflag [#allocation3], %s117
          %s119 = sand.u32 %s27, 1
          %s120 = smul.addr %s119, 8
          %s121 = scalar_lea.vmem [#allocation2], %s120
          %123 = vsyncadd %s118, 0
          %s124 = smul.addr %s17, 8
          %s125 = scalar_lea.hbm %s0, %s124
          %s127 = sshll.u32 %s125, 4
          %s128 = int_to_ptr.hbm [resolvable:$true] %s127
          %s129 = sshll.u32 %s121, 4
          %s130 = int_to_ptr.vmem [resolvable:$true] %s129
          %132 = dma.hbm_to_vmem [thread:$0]  %s128, 128, %s130, %s118
        $region20: #{tpu_custom_call.1} parent=15 // pred_fallthru
          _
        // Predicated region
        $region21: #{tpu_custom_call.1} parent=15 // pred_check
          %p133 = pneg %p63
        $region22: #{tpu_custom_call.1} parent=15 // pred_check_branch
          %135 = sbr.rel (%p133) target = $region24
        $region23: #{tpu_custom_call.1} parent=15 // pred_region
          %s136 = sand.u32 %s53, 1
          %s137 = scalar_lea.sflag [#allocation6], %s136
          %s138 = sand.u32 %s53, 1
          %s139 = smul.addr %s138, 16
          %s140 = scalar_lea.vmem [#allocation5], %s139
          %142 = vsyncadd %s137, 0
          %s143 = smul.addr %s17, 2
          %s144 = smul.addr %s143, 8
          %s145 = scalar_lea.hbm %s1, %s144
          %s147 = sshll.u32 %s145, 4
          %s148 = int_to_ptr.hbm [resolvable:$true] %s147
          %s149 = sshll.u32 %s140, 4
          %s150 = int_to_ptr.vmem [resolvable:$true] %s149
          %152 = dma.hbm_to_vmem [thread:$0]  %s148, 256, %s150, %s137
        $region24: #{tpu_custom_call.1} parent=15 // pred_fallthru
          _
      $region16: #{tpu_custom_call.1} parent=5 // pred_fallthru
        _
      %p153 = scmp.le.s32.totalorder 1, %s17
      %p154 = scmp.lt.s32.totalorder %s17, 3
      %p155 = pnand %p153, %p154
      %p156 = pneg %p155
      // Predicated region
      $region25: #{tpu_custom_call.1} parent=5 // pred_check
        _
      $region26: #{tpu_custom_call.1} parent=5 // pred_check_branch
        %158 = sbr.rel (%p155) target = $region28
      $region27: #{tpu_custom_call.1} parent=5 // pred_region
        %s159 = ssub.s32 %s17, 1
        %s160 = sand.u32 %s30, 1
        %s161 = scalar_lea.sflag [#allocation3], %s160
        %s162 = sand.u32 %s30, 1
        %s163 = smul.addr %s162, 8
        %s164 = scalar_lea.vmem [#allocation2], %s163
        // Predicated region
        $region29: #{tpu_custom_call.1} parent=27 // pred_check
          %p165 = pneg %p43
        $region30: #{tpu_custom_call.1} parent=27 // pred_check_branch
          %167 = sbr.rel (%p165) target = $region32
        $region31: #{tpu_custom_call.1} parent=27 // pred_region
          %169 = dma.done %s161, 128
        $region32: #{tpu_custom_call.1} parent=27 // pred_fallthru
          _
        %s170 = sand.u32 %s56, 1
        %s171 = scalar_lea.sflag [#allocation6], %s170
        %s172 = sand.u32 %s56, 1
        %s173 = smul.addr %s172, 16
        %s174 = scalar_lea.vmem [#allocation5], %s173
        // Predicated region
        $region33: #{tpu_custom_call.1} parent=27 // pred_check
          %p175 = pneg %p69
        $region34: #{tpu_custom_call.1} parent=27 // pred_check_branch
          %177 = sbr.rel (%p175) target = $region36
        $region35: #{tpu_custom_call.1} parent=27 // pred_region
          %179 = dma.done %s171, 256
        $region36: #{tpu_custom_call.1} parent=27 // pred_fallthru
          _
        %s180 = sand.u32 %s30, 1
        %s181 = scalar_lea.sflag [#allocation3], %s180
        %s182 = sand.u32 %s30, 1
        %s183 = smul.addr %s182, 8
        %s184 = scalar_lea.vmem [#allocation2], %s183
        %p185 = pneg %p43
        %p186 = pneg %p40
        %s187 = sand.u32 %s56, 1
        %s188 = scalar_lea.sflag [#allocation6], %s187
        %s189 = sand.u32 %s56, 1
        %s190 = smul.addr %s189, 16
        %s191 = scalar_lea.vmem [#allocation5], %s190
        %p192 = pneg %p69
        %p193 = pneg %p66
        %p194 = pneg %p95
        %p195 = pneg %p92
        %s196 = sand.u32 %s82, 1
        %s197 = scalar_lea.sflag [#allocation4], %s196
        %s198 = sand.u32 %s82, 1
        %s199 = smul.addr %s198, 24
        %s200 = scalar_lea.vmem [#allocation7], %s199
        %v201 = vld [vmem:[%s164] sm:$0xff]
        %202 = vst [vmem:[%s200] sm:$0xff] %v201
        %v203 = vld [vmem:[%s174] sm:$0xff]
        %v204 = vld [vmem:[%s174 + $0x8] sm:$0xff]
        %205 = vst [vmem:[%s200 + $0x8] sm:$0xff] %v203
        %206 = vst [vmem:[%s200 + $0x10] sm:$0xff] %v204
        %s207 = sand.u32 %s82, 1
        %s208 = scalar_lea.sflag [#allocation4], %s207
        %s209 = sand.u32 %s82, 1
        %s210 = smul.addr %s209, 24
        %s211 = scalar_lea.vmem [#allocation7], %s210
        // Predicated region
        $region37: #{tpu_custom_call.1} parent=27 // pred_check
          %p212 = pneg %p92
        $region38: #{tpu_custom_call.1} parent=27 // pred_check_branch
          %214 = sbr.rel (%p212) target = $region40
        $region39: #{tpu_custom_call.1} parent=27 // pred_region
          %216 = vsyncadd %s208, 0
          %s217 = smul.addr %s22, 3
          %s218 = smul.addr %s217, 8
          %s219 = scalar_lea.hbm %s2, %s218
          %s221 = sshll.u32 %s211, 4
          %s222 = int_to_ptr.vmem [resolvable:$true] %s221
          %s223 = sshll.u32 %s219, 4
          %s224 = int_to_ptr.hbm [resolvable:$true] %s223
          %226 = dma.vmem_to_hbm [thread:$0]  %s222, 384, %s224, %s208
        $region40: #{tpu_custom_call.1} parent=27 // pred_fallthru
          _
      $region28: #{tpu_custom_call.1} parent=5 // pred_fallthru
        _
      %p227 = scmp.le.s32.totalorder 2, %s17
      // Predicated region
      $region41: #{tpu_custom_call.1} parent=5 // pred_check
        %p228 = pneg %p227
      $region42: #{tpu_custom_call.1} parent=5 // pred_check_branch
        %230 = sbr.rel (%p228) target = $region44
      $region43: #{tpu_custom_call.1} parent=5 // pred_region
        %s231 = ssub.s32 %s17, 2
        // Predicated region
        $region45: #{tpu_custom_call.1} parent=43 // pred_check
          %p232 = pneg %p98
        $region46: #{tpu_custom_call.1} parent=43 // pred_check_branch
          %234 = sbr.rel (%p232) target = $region48
        $region47: #{tpu_custom_call.1} parent=43 // pred_region
          %s235 = sand.u32 %s83, 1
          %s236 = scalar_lea.sflag [#allocation4], %s235
          %s237 = sand.u32 %s83, 1
          %s238 = smul.addr %s237, 24
          %s239 = scalar_lea.vmem [#allocation7], %s238
          %241 = dma.done %s236, 384
        $region48: #{tpu_custom_call.1} parent=43 // pred_fallthru
          _
      $region44: #{tpu_custom_call.1} parent=5 // pred_fallthru
        _
    $region6: #{tpu_custom_call.1} parent=1 // loop_footer
      %s21 = sadd.s32 1, %s17
    $region7: #{tpu_custom_call.1} parent=1 // loop_footer_branch
      %16 = sbr.rel target = $region3
    $region8: #{tpu_custom_call.1} parent=1 // loop_exit
      _
    %242 = vsyncpa [#allocation3], 1
    %s243 = scalar_lea.sflag [#allocation3], 1
    %244 = vsyncpa %s243, 1
    %245 = vsyncpa [#allocation6], 1
    %s246 = scalar_lea.sflag [#allocation6], 1
    %247 = vsyncpa %s246, 1
    %248 = vsyncpa [#allocation4], 1
    %s249 = scalar_lea.sflag [#allocation4], 1
    %250 = vsyncpa %s249, 1

</llo_original>
